<compile_context>
chip_gen: v7x
topology: tpu7x:2x2x1
jax: 0.10.0
libtpu: 0.0.40
codegen_flags: <defaults>
</compile_context>

<pallas_src>
import jax
import jax.numpy as jnp
from jax.experimental import pallas as pl
from jax.experimental.pallas import tpu as pltpu

LANE = 128
MAX_BLOCK_ROWS = 2048   # (2048, 128) f32 = 1 MiB per block buffer
MIN_BLOCK_ROWS = 256    # (256, 128) f32 = 128 KiB, already amortises step overhead


def _approx_act_kernel(bias_ref, weight_ref, x_ref, o_ref):
    """out = sum_k relu(x - bias[k]) * weight[k], elementwise over the block."""
    K = bias_ref.shape[0]
    n_acc = 4                                        # independent partial accumulators
    x = x_ref[...]                                   # (block_rows, 128) f32
    parts = []
    for a in range(min(n_acc, K)):
        acc = None
        for k in range(a, K, n_acc):
            # SMEM scalar -> splat operand; sub + max + mul + add per k.
            term = jnp.maximum(x - bias_ref[k], 0.0) * weight_ref[k]
            acc = term if acc is None else acc + term
        parts.append(acc)
    if not parts:                                    # K == 0 (not hit for bits >= 1)
        o_ref[...] = jnp.zeros_like(x)
        return
    # Balanced-tree combine of the partial accumulators.
    while len(parts) > 1:
        nxt = [parts[i] + parts[i + 1] for i in range(0, len(parts) - 1, 2)]
        if len(parts) % 2:
            nxt.append(parts[-1])
        parts = nxt
    o_ref[...] = parts[0]


def _pick_block_rows(rows: int) -> int:
    """Block rows: multiple of 8, <= 1 MiB block, ~8 grid steps when possible."""
    if rows <= MIN_BLOCK_ROWS:
        return rows                    # single block (block dim == full array dim is legal)
    target = -(-rows // 8)             # aim for ~8 grid steps (v7x megacore sharding)
    br = max(MIN_BLOCK_ROWS, min(MAX_BLOCK_ROWS, target))
    return (br // 8) * 8               # sublane-tile multiple


def make_approx_act_params(bits: int, key, bounds=(-100.0, 100.0)):
    """Deterministic init + clamp() + get_weight_bias() from the PyTorch module."""
    n = 2 ** bits - 1 + 2
    kx, ky = jax.random.split(key)
    x_list = jax.random.uniform(kx, (n,), minval=-4.0, maxval=4.0, dtype=jnp.float32)
    y_list = 0.02 * jax.random.normal(ky, (n,), dtype=jnp.float32)

    # clamp()
    x_list = jnp.clip(x_list, bounds[0], bounds[1])
    x_list = jnp.sort(x_list)
    x_list = x_list.at[0].set(bounds[0] * 2.0).at[-1].set(bounds[1] * 2.0)
    y_list = y_list.at[0].set(0.0).at[1].set(0.0)
    y_list = y_list.at[-2].set(x_list[-2]).at[-1].set(x_list[-1])

    # get_weight_bias()
    slope = jnp.diff(y_list) / (jnp.diff(x_list) + 1e-8)
    weight = jnp.diff(slope)        # (2**bits - 1,)
    bias = x_list[1:-1]             # (2**bits - 1,)
    return weight, bias


def approx_act_forward(x, weight, bias):
    """x: (N,) f32 -> (N,) f32, out[i] = sum_k relu(x[i] - bias[k]) * weight[k]."""
    orig_shape = x.shape
    xf = x.astype(jnp.float32).reshape(-1)
    N = xf.shape[0]

    # Only the sub-128 lane remainder is padded (and only when needed); the
    # row-dimension tail is handled by Pallas partial blocks via the cdiv grid,
    # so lane-aligned inputs incur no extra HBM pad/slice pass at all.
    pad = (-N) % LANE
    if pad:
        xf = jnp.pad(xf, (0, pad))
    rows = (N + pad) // LANE
    x2d = xf.reshape(rows, LANE)

    block_rows = _pick_block_rows(rows)
    grid = (pl.cdiv(rows, block_rows),)

    out2d = pl.pallas_call(
        _approx_act_kernel,
        out_shape=jax.ShapeDtypeStruct((rows, LANE), jnp.float32),
        grid=grid,
        in_specs=[
            pl.BlockSpec(memory_space=pltpu.MemorySpace.SMEM),    # bias   (K,)
            pl.BlockSpec(memory_space=pltpu.MemorySpace.SMEM),    # weight (K,)
            pl.BlockSpec((block_rows, LANE), lambda i: (i, 0)),   # x block
        ],
        out_specs=pl.BlockSpec((block_rows, LANE), lambda i: (i, 0)),
        compiler_params=pltpu.CompilerParams(
            dimension_semantics=("parallel",),
            vmem_limit_bytes=32 * 1024 * 1024,
        ),
    )(bias.astype(jnp.float32), weight.astype(jnp.float32), x2d)

    out = out2d.reshape(-1)
    if pad:
        out = out[:N]
    return out.reshape(orig_shape)


if __name__ == "__main__":
    key = jax.random.PRNGKey(0)
    kp, kx = jax.random.split(key)

    bits = 4                                   # K = 2**4 - 1 = 15 breakpoints
    weight, bias = make_approx_act_params(bits, kp)

    # Shapes covering: lane-aligned (no pad, single block), unaligned
    # (lane-remainder pad), and multi-block grid with a partial last block.
    for n in (2048, 1000, 40000):
        x = jax.random.normal(jax.random.fold_in(kx, n), (n,), dtype=jnp.float32)
        out = jax.block_until_ready(approx_act_forward(x, weight, bias))

        # Pure-JAX reference of the PyTorch forward (1-D input branch).
        ref = jnp.sum(
            jnp.maximum(x[:, None] - bias[None, :], 0.0) * weight[None, :], axis=1
        )
        assert out.shape == (n,)
        assert jnp.allclose(out, ref, rtol=1e-4, atol=1e-4), f"mismatch at N={n}"

    print("KERNEL_OK")
</pallas_src>

<mosaic_0001>
module attributes {stable_mosaic.version = 11 : i64} {
  func.func @_approx_act_kernel(%arg0: i32, %arg1: memref<15xf32, #tpu.memory_space<smem>>, %arg2: memref<15xf32, #tpu.memory_space<smem>>, %arg3: memref<16x128xf32, #tpu.memory_space<vmem>>, %arg4: memref<16x128xf32, #tpu.memory_space<vmem>>) attributes {dimension_semantics = [#tpu.dimension_semantics<parallel>], iteration_bounds = array<i64: 1>, scalar_prefetch = 0 : i64, scratch_operands = 0 : i64, tpu.core_type = #tpu.core_type<tc>, window_params = [{transform_indices = @transform_0, window_bounds = array<i64: 15>}, {transform_indices = @transform_1, window_bounds = array<i64: 15>}, {transform_indices = @transform_2, window_bounds = array<i64: 16, 128>}, {transform_indices = @transform_3, window_bounds = array<i64: 16, 128>}]} {
    %c0 = arith.constant 0 : index
    %c0_0 = arith.constant 0 : index
    %0 = vector.load %arg3[%c0, %c0_0] : memref<16x128xf32, #tpu.memory_space<vmem>>, vector<16x128xf32>
    %c0_1 = arith.constant 0 : index
    %1 = memref.load %arg1[%c0_1] : memref<15xf32, #tpu.memory_space<smem>>
    %2 = vector.broadcast %1 : f32 to vector<16x128xf32>
    %3 = arith.subf %0, %2 : vector<16x128xf32>
    %cst = arith.constant 0.000000e+00 : f32
    %4 = vector.broadcast %cst : f32 to vector<16x128xf32>
    %5 = arith.maximumf %3, %4 : vector<16x128xf32>
    %c0_2 = arith.constant 0 : index
    %6 = memref.load %arg2[%c0_2] : memref<15xf32, #tpu.memory_space<smem>>
    %7 = vector.broadcast %6 : f32 to vector<16x128xf32>
    %8 = arith.mulf %5, %7 : vector<16x128xf32>
    %c4 = arith.constant 4 : index
    %9 = memref.load %arg1[%c4] : memref<15xf32, #tpu.memory_space<smem>>
    %10 = vector.broadcast %9 : f32 to vector<16x128xf32>
    %11 = arith.subf %0, %10 : vector<16x128xf32>
    %cst_3 = arith.constant 0.000000e+00 : f32
    %12 = vector.broadcast %cst_3 : f32 to vector<16x128xf32>
    %13 = arith.maximumf %11, %12 : vector<16x128xf32>
    %c4_4 = arith.constant 4 : index
    %14 = memref.load %arg2[%c4_4] : memref<15xf32, #tpu.memory_space<smem>>
    %15 = vector.broadcast %14 : f32 to vector<16x128xf32>
    %16 = arith.mulf %13, %15 : vector<16x128xf32>
    %17 = arith.addf %8, %16 : vector<16x128xf32>
    %c8 = arith.constant 8 : index
    %18 = memref.load %arg1[%c8] : memref<15xf32, #tpu.memory_space<smem>>
    %19 = vector.broadcast %18 : f32 to vector<16x128xf32>
    %20 = arith.subf %0, %19 : vector<16x128xf32>
    %cst_5 = arith.constant 0.000000e+00 : f32
    %21 = vector.broadcast %cst_5 : f32 to vector<16x128xf32>
    %22 = arith.maximumf %20, %21 : vector<16x128xf32>
    %c8_6 = arith.constant 8 : index
    %23 = memref.load %arg2[%c8_6] : memref<15xf32, #tpu.memory_space<smem>>
    %24 = vector.broadcast %23 : f32 to vector<16x128xf32>
    %25 = arith.mulf %22, %24 : vector<16x128xf32>
    %26 = arith.addf %17, %25 : vector<16x128xf32>
    %c12 = arith.constant 12 : index
    %27 = memref.load %arg1[%c12] : memref<15xf32, #tpu.memory_space<smem>>
    %28 = vector.broadcast %27 : f32 to vector<16x128xf32>
    %29 = arith.subf %0, %28 : vector<16x128xf32>
    %cst_7 = arith.constant 0.000000e+00 : f32
    %30 = vector.broadcast %cst_7 : f32 to vector<16x128xf32>
    %31 = arith.maximumf %29, %30 : vector<16x128xf32>
    %c12_8 = arith.constant 12 : index
    %32 = memref.load %arg2[%c12_8] : memref<15xf32, #tpu.memory_space<smem>>
    %33 = vector.broadcast %32 : f32 to vector<16x128xf32>
    %34 = arith.mulf %31, %33 : vector<16x128xf32>
    %35 = arith.addf %26, %34 : vector<16x128xf32>
    %c1 = arith.constant 1 : index
    %36 = memref.load %arg1[%c1] : memref<15xf32, #tpu.memory_space<smem>>
    %37 = vector.broadcast %36 : f32 to vector<16x128xf32>
    %38 = arith.subf %0, %37 : vector<16x128xf32>
    %cst_9 = arith.constant 0.000000e+00 : f32
    %39 = vector.broadcast %cst_9 : f32 to vector<16x128xf32>
    %40 = arith.maximumf %38, %39 : vector<16x128xf32>
    %c1_10 = arith.constant 1 : index
    %41 = memref.load %arg2[%c1_10] : memref<15xf32, #tpu.memory_space<smem>>
    %42 = vector.broadcast %41 : f32 to vector<16x128xf32>
    %43 = arith.mulf %40, %42 : vector<16x128xf32>
    %c5 = arith.constant 5 : index
    %44 = memref.load %arg1[%c5] : memref<15xf32, #tpu.memory_space<smem>>
    %45 = vector.broadcast %44 : f32 to vector<16x128xf32>
    %46 = arith.subf %0, %45 : vector<16x128xf32>
    %cst_11 = arith.constant 0.000000e+00 : f32
    %47 = vector.broadcast %cst_11 : f32 to vector<16x128xf32>
    %48 = arith.maximumf %46, %47 : vector<16x128xf32>
    %c5_12 = arith.constant 5 : index
    %49 = memref.load %arg2[%c5_12] : memref<15xf32, #tpu.memory_space<smem>>
    %50 = vector.broadcast %49 : f32 to vector<16x128xf32>
    %51 = arith.mulf %48, %50 : vector<16x128xf32>
    %52 = arith.addf %43, %51 : vector<16x128xf32>
    %c9 = arith.constant 9 : index
    %53 = memref.load %arg1[%c9] : memref<15xf32, #tpu.memory_space<smem>>
    %54 = vector.broadcast %53 : f32 to vector<16x128xf32>
    %55 = arith.subf %0, %54 : vector<16x128xf32>
    %cst_13 = arith.constant 0.000000e+00 : f32
    %56 = vector.broadcast %cst_13 : f32 to vector<16x128xf32>
    %57 = arith.maximumf %55, %56 : vector<16x128xf32>
    %c9_14 = arith.constant 9 : index
    %58 = memref.load %arg2[%c9_14] : memref<15xf32, #tpu.memory_space<smem>>
    %59 = vector.broadcast %58 : f32 to vector<16x128xf32>
    %60 = arith.mulf %57, %59 : vector<16x128xf32>
    %61 = arith.addf %52, %60 : vector<16x128xf32>
    %c13 = arith.constant 13 : index
    %62 = memref.load %arg1[%c13] : memref<15xf32, #tpu.memory_space<smem>>
    %63 = vector.broadcast %62 : f32 to vector<16x128xf32>
    %64 = arith.subf %0, %63 : vector<16x128xf32>
    %cst_15 = arith.constant 0.000000e+00 : f32
    %65 = vector.broadcast %cst_15 : f32 to vector<16x128xf32>
    %66 = arith.maximumf %64, %65 : vector<16x128xf32>
    %c13_16 = arith.constant 13 : index
    %67 = memref.load %arg2[%c13_16] : memref<15xf32, #tpu.memory_space<smem>>
    %68 = vector.broadcast %67 : f32 to vector<16x128xf32>
    %69 = arith.mulf %66, %68 : vector<16x128xf32>
    %70 = arith.addf %61, %69 : vector<16x128xf32>
    %c2 = arith.constant 2 : index
    %71 = memref.load %arg1[%c2] : memref<15xf32, #tpu.memory_space<smem>>
    %72 = vector.broadcast %71 : f32 to vector<16x128xf32>
    %73 = arith.subf %0, %72 : vector<16x128xf32>
    %cst_17 = arith.constant 0.000000e+00 : f32
    %74 = vector.broadcast %cst_17 : f32 to vector<16x128xf32>
    %75 = arith.maximumf %73, %74 : vector<16x128xf32>
    %c2_18 = arith.constant 2 : index
    %76 = memref.load %arg2[%c2_18] : memref<15xf32, #tpu.memory_space<smem>>
    %77 = vector.broadcast %76 : f32 to vector<16x128xf32>
    %78 = arith.mulf %75, %77 : vector<16x128xf32>
    %c6 = arith.constant 6 : index
    %79 = memref.load %arg1[%c6] : memref<15xf32, #tpu.memory_space<smem>>
    %80 = vector.broadcast %79 : f32 to vector<16x128xf32>
    %81 = arith.subf %0, %80 : vector<16x128xf32>
    %cst_19 = arith.constant 0.000000e+00 : f32
    %82 = vector.broadcast %cst_19 : f32 to vector<16x128xf32>
    %83 = arith.maximumf %81, %82 : vector<16x128xf32>
    %c6_20 = arith.constant 6 : index
    %84 = memref.load %arg2[%c6_20] : memref<15xf32, #tpu.memory_space<smem>>
    %85 = vector.broadcast %84 : f32 to vector<16x128xf32>
    %86 = arith.mulf %83, %85 : vector<16x128xf32>
    %87 = arith.addf %78, %86 : vector<16x128xf32>
    %c10 = arith.constant 10 : index
    %88 = memref.load %arg1[%c10] : memref<15xf32, #tpu.memory_space<smem>>
    %89 = vector.broadcast %88 : f32 to vector<16x128xf32>
    %90 = arith.subf %0, %89 : vector<16x128xf32>
    %cst_21 = arith.constant 0.000000e+00 : f32
    %91 = vector.broadcast %cst_21 : f32 to vector<16x128xf32>
    %92 = arith.maximumf %90, %91 : vector<16x128xf32>
    %c10_22 = arith.constant 10 : index
    %93 = memref.load %arg2[%c10_22] : memref<15xf32, #tpu.memory_space<smem>>
    %94 = vector.broadcast %93 : f32 to vector<16x128xf32>
    %95 = arith.mulf %92, %94 : vector<16x128xf32>
    %96 = arith.addf %87, %95 : vector<16x128xf32>
    %c14 = arith.constant 14 : index
    %97 = memref.load %arg1[%c14] : memref<15xf32, #tpu.memory_space<smem>>
    %98 = vector.broadcast %97 : f32 to vector<16x128xf32>
    %99 = arith.subf %0, %98 : vector<16x128xf32>
    %cst_23 = arith.constant 0.000000e+00 : f32
    %100 = vector.broadcast %cst_23 : f32 to vector<16x128xf32>
    %101 = arith.maximumf %99, %100 : vector<16x128xf32>
    %c14_24 = arith.constant 14 : index
    %102 = memref.load %arg2[%c14_24] : memref<15xf32, #tpu.memory_space<smem>>
    %103 = vector.broadcast %102 : f32 to vector<16x128xf32>
    %104 = arith.mulf %101, %103 : vector<16x128xf32>
    %105 = arith.addf %96, %104 : vector<16x128xf32>
    %c3 = arith.constant 3 : index
    %106 = memref.load %arg1[%c3] : memref<15xf32, #tpu.memory_space<smem>>
    %107 = vector.broadcast %106 : f32 to vector<16x128xf32>
    %108 = arith.subf %0, %107 : vector<16x128xf32>
    %cst_25 = arith.constant 0.000000e+00 : f32
    %109 = vector.broadcast %cst_25 : f32 to vector<16x128xf32>
    %110 = arith.maximumf %108, %109 : vector<16x128xf32>
    %c3_26 = arith.constant 3 : index
    %111 = memref.load %arg2[%c3_26] : memref<15xf32, #tpu.memory_space<smem>>
    %112 = vector.broadcast %111 : f32 to vector<16x128xf32>
    %113 = arith.mulf %110, %112 : vector<16x128xf32>
    %c7 = arith.constant 7 : index
    %114 = memref.load %arg1[%c7] : memref<15xf32, #tpu.memory_space<smem>>
    %115 = vector.broadcast %114 : f32 to vector<16x128xf32>
    %116 = arith.subf %0, %115 : vector<16x128xf32>
    %cst_27 = arith.constant 0.000000e+00 : f32
    %117 = vector.broadcast %cst_27 : f32 to vector<16x128xf32>
    %118 = arith.maximumf %116, %117 : vector<16x128xf32>
    %c7_28 = arith.constant 7 : index
    %119 = memref.load %arg2[%c7_28] : memref<15xf32, #tpu.memory_space<smem>>
    %120 = vector.broadcast %119 : f32 to vector<16x128xf32>
    %121 = arith.mulf %118, %120 : vector<16x128xf32>
    %122 = arith.addf %113, %121 : vector<16x128xf32>
    %c11 = arith.constant 11 : index
    %123 = memref.load %arg1[%c11] : memref<15xf32, #tpu.memory_space<smem>>
    %124 = vector.broadcast %123 : f32 to vector<16x128xf32>
    %125 = arith.subf %0, %124 : vector<16x128xf32>
    %cst_29 = arith.constant 0.000000e+00 : f32
    %126 = vector.broadcast %cst_29 : f32 to vector<16x128xf32>
    %127 = arith.maximumf %125, %126 : vector<16x128xf32>
    %c11_30 = arith.constant 11 : index
    %128 = memref.load %arg2[%c11_30] : memref<15xf32, #tpu.memory_space<smem>>
    %129 = vector.broadcast %128 : f32 to vector<16x128xf32>
    %130 = arith.mulf %127, %129 : vector<16x128xf32>
    %131 = arith.addf %122, %130 : vector<16x128xf32>
    %132 = arith.addf %35, %70 : vector<16x128xf32>
    %133 = arith.addf %105, %131 : vector<16x128xf32>
    %134 = arith.addf %132, %133 : vector<16x128xf32>
    %c0_31 = arith.constant 0 : index
    %c0_32 = arith.constant 0 : index
    %135 = vector.load %arg4[%c0_31, %c0_32] : memref<16x128xf32, #tpu.memory_space<vmem>>, vector<16x128xf32>
    tpu.vector_store %arg4[%c0_31, %c0_32], %134 {strides = array<i32>} : memref<16x128xf32, #tpu.memory_space<vmem>>, vector<16x128xf32>,
    return
  }
  func.func @transform_0(%arg0: i32) -> i32 {
    %c0_i32 = arith.constant 0 : i32
    %c0_i32_0 = arith.constant 0 : i32
    return %c0_i32 : i32
  }
  func.func @transform_1(%arg0: i32) -> i32 {
    %c0_i32 = arith.constant 0 : i32
    %c0_i32_0 = arith.constant 0 : i32
    return %c0_i32 : i32
  }
  func.func @transform_2(%arg0: i32) -> (i32, i32) {
    %c0_i32 = arith.constant 0 : i32
    %c0_i32_0 = arith.constant 0 : i32
    return %arg0, %c0_i32 : i32, i32
  }
  func.func @transform_3(%arg0: i32) -> (i32, i32) {
    %c0_i32 = arith.constant 0 : i32
    %c0_i32_0 = arith.constant 0 : i32
    return %arg0, %c0_i32 : i32, i32
  }
}

</mosaic_0001>

<llo_original>
// kernel: tpu_custom_call.1
$region0: #{tpu_custom_call.1}
  #allocation0 [shape = 'u32[]', space=smem, size = 0x4, offset = 0x4, fixed_abs, tag = 'smem constant byte address 0x4 - core index']
  #allocation1 [shape = 'u32[144,128]{1,0:T(1,128)}', space=vmem, size = 0x12000, scoped, tag = 'internal scratch']
  %s0 = inlined_call_operand.hbm [shape: f32[15], index: 0, kind: input, shape index: {}]
  %s1 = inlined_call_operand.vmem [shape: f32[15], index: 1, kind: input, shape index: {}]
  %s2 = inlined_call_operand.hbm [shape: f32[16,128], index: 2, kind: input, shape index: {}]
  %s3 = inlined_call_operand.hbm [shape: f32[16,128], index: 3, kind: output, shape index: {}]
  %s4 = sld [smem:[#allocation0]]
  $region34: #{tpu_custom_call.1} parent=0
    _
  %s6 = ssub.s32 1, %s4
  %s7 = scalar_select 0, %s6, %s4
  $region1: #{tpu_custom_call.1} parent=0
    #allocation2 [shape = 'u8[512]{0}', space=smem, size = 0x200, scoped, tag = 'input window, operand 0, single buffered']
    #allocation3 [shape = 's32[1]{0}', space=sflag, size = 0x4, scoped, tag = 'scoped memory for tpu_custom_call.1']
    #allocation4 [shape = 's32[1]{0}', space=sflag, size = 0x4, scoped, tag = 'scoped memory for tpu_custom_call.1']
    #allocation5 [shape = 's32[1]{0}', space=sflag, size = 0x4, scoped, tag = 'scoped memory for tpu_custom_call.1']
    #allocation6 [shape = 's32[1]{0}', space=sflag, size = 0x4, scoped, tag = 'scoped memory for tpu_custom_call.1']
    #allocation7 [shape = 'u8[512]{0}', space=smem, size = 0x200, scoped, tag = 'input window, operand 1, single buffered']
    #allocation8 [shape = 'u8[8192]{0}', space=vmem, size = 0x2000, scoped, tag = 'input window, operand 2, single buffered']
    #allocation9 [shape = 'u8[8192]{0}', space=vmem, size = 0x2000, scoped, tag = 'output window, operand 0, single buffered']
    %8 = vsyncpa [#allocation5], 0
    %9 = vsyncpa [#allocation6], 0
    %10 = vsyncpa [#allocation3], 0
    %11 = vsyncpa [#allocation4], 0
    // Predicated region
    $region2: #{tpu_custom_call.1} parent=1 // pred_check
      _
    $region3: #{tpu_custom_call.1} parent=1 // pred_check_branch
      %13 = sbr.rel (0) target = $region5
    $region4: #{tpu_custom_call.1} parent=1 // pred_region
      %s15 = ssub.s32 16, 16
      %16 = vsyncadd [#allocation5], %s15
      %19 = dma.hbm_to_smem %s0, 16, [#allocation2], [#allocation5]
    $region5: #{tpu_custom_call.1} parent=1 // pred_fallthru
      _
    // Predicated region
    $region6: #{tpu_custom_call.1} parent=1 // pred_check
      _
    $region7: #{tpu_custom_call.1} parent=1 // pred_check_branch
      %21 = sbr.rel (0) target = $region9
    $region8: #{tpu_custom_call.1} parent=1 // pred_region
      %s23 = ssub.s32 16, 16
      %24 = vsyncadd [#allocation6], %s23
      %s26 = sshll.u32 %s1, 4
      %s27 = int_to_ptr.vmem [resolvable:$true] %s26
      %29 = dma.vmem_to_smem %s27, 16, [#allocation7], [#allocation6]
    $region9: #{tpu_custom_call.1} parent=1 // pred_fallthru
      _
    // Predicated region
    $region10: #{tpu_custom_call.1} parent=1 // pred_check
      _
    $region11: #{tpu_custom_call.1} parent=1 // pred_check_branch
      %31 = sbr.rel (0) target = $region13
    $region12: #{tpu_custom_call.1} parent=1 // pred_region
      %s33 = ssub.s32 256, 256
      %34 = vsyncadd [#allocation3], %s33
      %s35 = sshll.u32 [#allocation8], 4
      %s36 = int_to_ptr.vmem [resolvable:$true] %s35
      %41 = dma.hbm_to_vmem [thread:$0]  %s2, 256, %s36, [#allocation3], 128, 128, 8
    $region13: #{tpu_custom_call.1} parent=1 // pred_fallthru
      _
    // Predicated region
    $region14: #{tpu_custom_call.1} parent=1 // pred_check
      _
    $region15: #{tpu_custom_call.1} parent=1 // pred_check_branch
      %43 = sbr.rel (0) target = $region17
    $region16: #{tpu_custom_call.1} parent=1 // pred_region
      %44 = dma.done [#allocation5], 16
    $region17: #{tpu_custom_call.1} parent=1 // pred_fallthru
      _
    // Predicated region
    $region18: #{tpu_custom_call.1} parent=1 // pred_check
      _
    $region19: #{tpu_custom_call.1} parent=1 // pred_check_branch
      %46 = sbr.rel (0) target = $region21
    $region20: #{tpu_custom_call.1} parent=1 // pred_region
      %47 = dma.done [#allocation6], 16
    $region21: #{tpu_custom_call.1} parent=1 // pred_fallthru
      _
    // Predicated region
    $region22: #{tpu_custom_call.1} parent=1 // pred_check
      _
    $region23: #{tpu_custom_call.1} parent=1 // pred_check_branch
      %49 = sbr.rel (0) target = $region25
    $region24: #{tpu_custom_call.1} parent=1 // pred_region
      %50 = dma.done [#allocation3], 256
    $region25: #{tpu_custom_call.1} parent=1 // pred_fallthru
      _
    %51 = sfence
    %v52 = vld [vmem:[#allocation8] sm:$0xff]
    %v53 = vld [vmem:[#allocation8 + $0x8] sm:$0xff]
    %s54 = sld [smem:[#allocation2]]
    %v55 = vstv %s54
    %v56 = vsub.f32 %v52, %v55
    %v57 = vsub.f32 %v53, %v55
    %v58 = vmax.f32 %v56, 0.0
    %v59 = vmax.f32 %v57, 0.0
    %s60 = sld [smem:[#allocation7]]
    %v61 = vstv %s60
    %v62 = vmul.f32 %v58, %v61
    %v63 = vmul.f32 %v59, %v61
    %s64 = sld [smem:[#allocation2 + $0x4]]
    %v65 = vstv %s64
    %v66 = vsub.f32 %v52, %v65
    %v67 = vsub.f32 %v53, %v65
    %v68 = vmax.f32 %v66, 0.0
    %v69 = vmax.f32 %v67, 0.0
    %s70 = sld [smem:[#allocation7 + $0x4]]
    %v71 = vstv %s70
    %v72 = vmul.f32 %v68, %v71
    %v73 = vmul.f32 %v69, %v71
    %v74 = vadd.f32 %v62, %v72
    %v75 = vadd.f32 %v63, %v73
    %s76 = sld [smem:[#allocation2 + $0x8]]
    %v77 = vstv %s76
    %v78 = vsub.f32 %v52, %v77
    %v79 = vsub.f32 %v53, %v77
    %v80 = vmax.f32 %v78, 0.0
    %v81 = vmax.f32 %v79, 0.0
    %s82 = sld [smem:[#allocation7 + $0x8]]
    %v83 = vstv %s82
    %v84 = vmul.f32 %v80, %v83
    %v85 = vmul.f32 %v81, %v83
    %v86 = vadd.f32 %v74, %v84
    %v87 = vadd.f32 %v75, %v85
    %s88 = sld [smem:[#allocation2 + $0xc]]
    %v89 = vstv %s88
    %v90 = vsub.f32 %v52, %v89
    %v91 = vsub.f32 %v53, %v89
    %v92 = vmax.f32 %v90, 0.0
    %v93 = vmax.f32 %v91, 0.0
    %s94 = sld [smem:[#allocation7 + $0xc]]
    %v95 = vstv %s94
    %v96 = vmul.f32 %v92, %v95
    %v97 = vmul.f32 %v93, %v95
    %v98 = vadd.f32 %v86, %v96
    %v99 = vadd.f32 %v87, %v97
    %s100 = sld [smem:[#allocation2 + $0x1]]
    %v101 = vstv %s100
    %v102 = vsub.f32 %v52, %v101
    %v103 = vsub.f32 %v53, %v101
    %v104 = vmax.f32 %v102, 0.0
    %v105 = vmax.f32 %v103, 0.0
    %s106 = sld [smem:[#allocation7 + $0x1]]
    %v107 = vstv %s106
    %v108 = vmul.f32 %v104, %v107
    %v109 = vmul.f32 %v105, %v107
    %s110 = sld [smem:[#allocation2 + $0x5]]
    %v111 = vstv %s110
    %v112 = vsub.f32 %v52, %v111
    %v113 = vsub.f32 %v53, %v111
    %v114 = vmax.f32 %v112, 0.0
    %v115 = vmax.f32 %v113, 0.0
    %s116 = sld [smem:[#allocation7 + $0x5]]
    %v117 = vstv %s116
    %v118 = vmul.f32 %v114, %v117
    %v119 = vmul.f32 %v115, %v117
    %v120 = vadd.f32 %v108, %v118
    %v121 = vadd.f32 %v109, %v119
    %s122 = sld [smem:[#allocation2 + $0x9]]
    %v123 = vstv %s122
    %v124 = vsub.f32 %v52, %v123
    %v125 = vsub.f32 %v53, %v123
    %v126 = vmax.f32 %v124, 0.0
    %v127 = vmax.f32 %v125, 0.0
    %s128 = sld [smem:[#allocation7 + $0x9]]
    %v129 = vstv %s128
    %v130 = vmul.f32 %v126, %v129
    %v131 = vmul.f32 %v127, %v129
    %v132 = vadd.f32 %v120, %v130
    %v133 = vadd.f32 %v121, %v131
    %s134 = sld [smem:[#allocation2 + $0xd]]
    %v135 = vstv %s134
    %v136 = vsub.f32 %v52, %v135
    %v137 = vsub.f32 %v53, %v135
    %v138 = vmax.f32 %v136, 0.0
    %v139 = vmax.f32 %v137, 0.0
    %s140 = sld [smem:[#allocation7 + $0xd]]
    %v141 = vstv %s140
    %v142 = vmul.f32 %v138, %v141
    %v143 = vmul.f32 %v139, %v141
    %v144 = vadd.f32 %v132, %v142
    %v145 = vadd.f32 %v133, %v143
    %s146 = sld [smem:[#allocation2 + $0x2]]
    %v147 = vstv %s146
    %v148 = vsub.f32 %v52, %v147
    %v149 = vsub.f32 %v53, %v147
    %v150 = vmax.f32 %v148, 0.0
    %v151 = vmax.f32 %v149, 0.0
    %s152 = sld [smem:[#allocation7 + $0x2]]
    %v153 = vstv %s152
    %v154 = vmul.f32 %v150, %v153
    %v155 = vmul.f32 %v151, %v153
    %s156 = sld [smem:[#allocation2 + $0x6]]
    %v157 = vstv %s156
    %v158 = vsub.f32 %v52, %v157
    %v159 = vsub.f32 %v53, %v157
    %v160 = vmax.f32 %v158, 0.0
    %v161 = vmax.f32 %v159, 0.0
    %s162 = sld [smem:[#allocation7 + $0x6]]
    %v163 = vstv %s162
    %v164 = vmul.f32 %v160, %v163
    %v165 = vmul.f32 %v161, %v163
    %v166 = vadd.f32 %v154, %v164
    %v167 = vadd.f32 %v155, %v165
    %s168 = sld [smem:[#allocation2 + $0xa]]
    %v169 = vstv %s168
    %v170 = vsub.f32 %v52, %v169
    %v171 = vsub.f32 %v53, %v169
    %v172 = vmax.f32 %v170, 0.0
    %v173 = vmax.f32 %v171, 0.0
    %s174 = sld [smem:[#allocation7 + $0xa]]
    %v175 = vstv %s174
    %v176 = vmul.f32 %v172, %v175
    %v177 = vmul.f32 %v173, %v175
    %v178 = vadd.f32 %v166, %v176
    %v179 = vadd.f32 %v167, %v177
    %s180 = sld [smem:[#allocation2 + $0xe]]
    %v181 = vstv %s180
    %v182 = vsub.f32 %v52, %v181
    %v183 = vsub.f32 %v53, %v181
    %v184 = vmax.f32 %v182, 0.0
    %v185 = vmax.f32 %v183, 0.0
    %s186 = sld [smem:[#allocation7 + $0xe]]
    %v187 = vstv %s186
    %v188 = vmul.f32 %v184, %v187
    %v189 = vmul.f32 %v185, %v187
    %v190 = vadd.f32 %v178, %v188
    %v191 = vadd.f32 %v179, %v189
    %s192 = sld [smem:[#allocation2 + $0x3]]
    %v193 = vstv %s192
    %v194 = vsub.f32 %v52, %v193
    %v195 = vsub.f32 %v53, %v193
    %v196 = vmax.f32 %v194, 0.0
    %v197 = vmax.f32 %v195, 0.0
    %s198 = sld [smem:[#allocation7 + $0x3]]
    %v199 = vstv %s198
    %v200 = vmul.f32 %v196, %v199
    %v201 = vmul.f32 %v197, %v199
    %s202 = sld [smem:[#allocation2 + $0x7]]
    %v203 = vstv %s202
    %v204 = vsub.f32 %v52, %v203
    %v205 = vsub.f32 %v53, %v203
    %v206 = vmax.f32 %v204, 0.0
    %v207 = vmax.f32 %v205, 0.0
    %s208 = sld [smem:[#allocation7 + $0x7]]
    %v209 = vstv %s208
    %v210 = vmul.f32 %v206, %v209
    %v211 = vmul.f32 %v207, %v209
    %v212 = vadd.f32 %v200, %v210
    %v213 = vadd.f32 %v201, %v211
    %s214 = sld [smem:[#allocation2 + $0xb]]
    %v215 = vstv %s214
    %v216 = vsub.f32 %v52, %v215
    %v217 = vsub.f32 %v53, %v215
    %v218 = vmax.f32 %v216, 0.0
    %v219 = vmax.f32 %v217, 0.0
    %s220 = sld [smem:[#allocation7 + $0xb]]
    %v221 = vstv %s220
    %v222 = vmul.f32 %v218, %v221
    %v223 = vmul.f32 %v219, %v221
    %v224 = vadd.f32 %v212, %v222
    %v225 = vadd.f32 %v213, %v223
    %v226 = vadd.f32 %v98, %v144
    %v227 = vadd.f32 %v99, %v145
    %v228 = vadd.f32 %v190, %v224
    %v229 = vadd.f32 %v191, %v225
    %v230 = vadd.f32 %v226, %v228
    %v231 = vadd.f32 %v227, %v229
    %232 = vst [vmem:[#allocation9] sm:$0xff] %v230
    %233 = vst [vmem:[#allocation9 + $0x8] sm:$0xff] %v231
    // Predicated region
    $region26: #{tpu_custom_call.1} parent=1 // pred_check
      _
    $region27: #{tpu_custom_call.1} parent=1 // pred_check_branch
      %235 = sbr.rel (0) target = $region29
    $region28: #{tpu_custom_call.1} parent=1 // pred_region
      %s237 = ssub.s32 256, 256
      %238 = vsyncadd [#allocation4], %s237
      %s239 = sshll.u32 [#allocation9], 4
      %s240 = int_to_ptr.vmem [resolvable:$true] %s239
      %245 = dma.vmem_to_hbm [thread:$0]  %s240, 256, %s3, [#allocation4], 128, 128, 8
    $region29: #{tpu_custom_call.1} parent=1 // pred_fallthru
      _
    // Predicated region
    $region30: #{tpu_custom_call.1} parent=1 // pred_check
      _
    $region31: #{tpu_custom_call.1} parent=1 // pred_check_branch
      %247 = sbr.rel (0) target = $region33
    $region32: #{tpu_custom_call.1} parent=1 // pred_region
      %248 = dma.done [#allocation4], 256
    $region33: #{tpu_custom_call.1} parent=1 // pred_fallthru
      _
    %249 = vsyncpa [#allocation3], 1
    %250 = vsyncpa [#allocation4], 1
    %251 = vsyncpa [#allocation5], 1
    %252 = vsyncpa [#allocation6], 1

</llo_original>
